<compile_context>
chip_gen: v6e
topology: v6e:2x2x1
jax: 0.10.0
libtpu: 0.0.40
codegen_flags: <defaults>
</compile_context>

<pallas_src>
import functools
import math

import jax
import jax.numpy as jnp
from jax.experimental import pallas as pl
from jax.experimental.pallas import tpu as pltpu


def _round_up(x, m):
    return (x + m - 1) // m * m


def _embedding_kernel(ids_ref, lut_ref, out_ref, *, scale, vocab):
    # ids_ref: (TM, 1) int32 token ids for this tile (column layout -> ids live
    #          in sublanes, broadcast along the lane/vocab axis is free).
    # lut_ref: (vocab, d_model) VMEM-resident embedding table (same block every
    #          grid step, so it is DMA'd from HBM only once).
    # out_ref: (TM, d_model) lane/sublane-dense output slab.
    ids = ids_ref[...]                                   # (TM, 1) int32
    tm = ids.shape[0]
    iota_v = jax.lax.broadcasted_iota(jnp.int32, (tm, vocab), 1)
    # One-hot with the sqrt(d_model) scale folded in. Exactly one nonzero term
    # per output row, so the MXU matmul reproduces lut[id] * scale exactly.
    onehot = jnp.where(ids == iota_v, scale, 0.0).astype(lut_ref.dtype)
    out = jnp.dot(onehot, lut_ref[...], preferred_element_type=jnp.float32)
    out_ref[...] = out.astype(out_ref.dtype)


def embedding_forward(ids, lut, *, block_tokens=512):
    """Pallas equivalent of `Embedding.forward`.

    ids: (batch, seq) int32 token ids
    lut: (vocab, d_model) float32 embedding table
    returns: (batch, seq, d_model) float32
    """
    batch, seq = ids.shape
    vocab, d_model = lut.shape
    n_tokens = batch * seq
    scale = math.sqrt(d_model)

    # Token-tile size: multiple of 8 (f32 sublane), capped at block_tokens,
    # shrunk for tiny inputs so we don't pad 16 tokens up to 512.
    tm = min(block_tokens, _round_up(n_tokens, 8))
    tm = _round_up(tm, 8)
    n_padded = _round_up(n_tokens, tm)
    n_tiles = n_padded // tm

    flat_ids = ids.reshape(n_tokens).astype(jnp.int32)
    if n_padded != n_tokens:
        # Pad with a valid index; the extra rows are sliced off below.
        flat_ids = jnp.pad(flat_ids, (0, n_padded - n_tokens))
    ids_col = flat_ids.reshape(n_padded, 1)

    kernel = functools.partial(_embedding_kernel, scale=scale, vocab=vocab)

    # Explicit VMEM budget: resident LUT + double-buffered ids/output tiles,
    # with headroom. Floor at 32 MiB (fits all gens incl. v7x's 64 MiB
    # physical), cap at 128 MiB.
    itemsize = jnp.dtype(lut.dtype).itemsize
    lut_bytes = vocab * d_model * itemsize
    out_block_bytes = tm * d_model * 4
    ids_block_bytes = tm * 4
    needed = 2 * (lut_bytes + out_block_bytes + ids_block_bytes) + (2 << 20)
    vmem_limit = int(min(128 * 1024 * 1024, max(32 * 1024 * 1024, needed)))

    out_flat = pl.pallas_call(
        kernel,
        out_shape=jax.ShapeDtypeStruct((n_padded, d_model), lut.dtype),
        grid_spec=pltpu.PrefetchScalarGridSpec(
            num_scalar_prefetch=0,
            grid=(n_tiles,),
            in_specs=[
                # Token ids for this tile (column vector).
                pl.BlockSpec((tm, 1), lambda i: (i, 0)),
                # Whole LUT, same block every step -> VMEM-resident, fetched once.
                pl.BlockSpec((vocab, d_model), lambda i: (0, 0)),
            ],
            out_specs=pl.BlockSpec((tm, d_model), lambda i: (i, 0)),
        ),
        compiler_params=pltpu.CompilerParams(
            dimension_semantics=("parallel",),
            vmem_limit_bytes=vmem_limit,
        ),
    )(ids_col, lut)

    if n_padded != n_tokens:
        out_flat = out_flat[:n_tokens]
    return out_flat.reshape(batch, seq, d_model)


if __name__ == "__main__":
    # Small, deterministic synthetic setup consistent with nn.Embedding(vocab, d_model).
    vocab = 32
    d_model = 128
    batch = 2
    seq = 8

    key = jax.random.PRNGKey(0)
    k_lut, k_ids = jax.random.split(key)

    # Deterministic "weights" (nn.Embedding weight shape: (vocab, d_model)).
    lut = jax.random.normal(k_lut, (vocab, d_model), dtype=jnp.float32)
    ids = jax.random.randint(k_ids, (batch, seq), minval=0, maxval=vocab, dtype=jnp.int32)

    out = embedding_forward(ids, lut)
    out = jax.block_until_ready(out)

    # Reference check: lut[x] * sqrt(d_model)
    ref = jnp.take(lut, ids, axis=0) * math.sqrt(d_model)
    assert out.shape == (batch, seq, d_model)
    assert jnp.allclose(out, ref, atol=1e-5, rtol=1e-5)

    print("KERNEL_OK")
</pallas_src>

<mosaic_0001>
module attributes {stable_mosaic.version = 11 : i64} {
  func.func @_embedding_kernel(%arg0: i32, %arg1: memref<16x1xi32, #tpu.memory_space<vmem>>, %arg2: memref<32x128xf32, #tpu.memory_space<vmem>>, %arg3: memref<16x128xf32, #tpu.memory_space<vmem>>) attributes {dimension_semantics = [#tpu.dimension_semantics<parallel>], iteration_bounds = array<i64: 1>, scalar_prefetch = 0 : i64, scratch_operands = 0 : i64, tpu.core_type = #tpu.core_type<tc>, window_params = [{transform_indices = @transform_0, window_bounds = array<i64: 16, 1>}, {pipeline_mode = #tpu.pipeline_mode<synchronous>, transform_indices = @transform_1, window_bounds = array<i64: 32, 128>}, {transform_indices = @transform_2, window_bounds = array<i64: 16, 128>}]} {
    %c0 = arith.constant 0 : index
    %c0_0 = arith.constant 0 : index
    %0 = vector.load %arg1[%c0, %c0_0] : memref<16x1xi32, #tpu.memory_space<vmem>>, vector<16x1xi32>
    %1 = tpu.iota {dimensions = array<i32: 1>} : vector<16x32xi32>
    %2 = vector.broadcast %0 : vector<16x1xi32> to vector<16x32xi32>
    %3 = arith.cmpi eq, %2, %1 : vector<16x32xi32>
    %cst = arith.constant 11.3137083 : f32
    %cst_1 = arith.constant 0.000000e+00 : f32
    %4 = vector.broadcast %cst : f32 to vector<16x32xf32>
    %5 = vector.broadcast %cst_1 : f32 to vector<16x32xf32>
    %6 = arith.select %3, %4, %5 : vector<16x32xi1>, vector<16x32xf32>
    %c0_2 = arith.constant 0 : index
    %c0_3 = arith.constant 0 : index
    %7 = vector.load %arg2[%c0_2, %c0_3] : memref<32x128xf32, #tpu.memory_space<vmem>>, vector<32x128xf32>
    %cst_4 = arith.constant dense<0.000000e+00> : vector<16x128xf32>
    %8 = tpu.matmul %6, %7, %cst_4 {dimension_numbers = #tpu.dot_dimension_numbers<[1], [0], [0], [1], [0, 0, 1, 1], [], []>} : vector<16x32xf32>, vector<32x128xf32>, vector<16x128xf32> -> vector<16x128xf32>
    %c0_5 = arith.constant 0 : index
    %c0_6 = arith.constant 0 : index
    %9 = vector.load %arg3[%c0_5, %c0_6] : memref<16x128xf32, #tpu.memory_space<vmem>>, vector<16x128xf32>
    tpu.vector_store %arg3[%c0_5, %c0_6], %8 {strides = array<i32>} : memref<16x128xf32, #tpu.memory_space<vmem>>, vector<16x128xf32>,
    return
  }
  func.func @transform_0(%arg0: i32) -> (i32, i32) {
    %c0_i32 = arith.constant 0 : i32
    %c0_i32_0 = arith.constant 0 : i32
    return %arg0, %c0_i32 : i32, i32
  }
  func.func @transform_1(%arg0: i32) -> (i32, i32) {
    %c0_i32 = arith.constant 0 : i32
    %c0_i32_0 = arith.constant 0 : i32
    %c0_i32_1 = arith.constant 0 : i32
    return %c0_i32, %c0_i32_0 : i32, i32
  }
  func.func @transform_2(%arg0: i32) -> (i32, i32) {
    %c0_i32 = arith.constant 0 : i32
    %c0_i32_0 = arith.constant 0 : i32
    return %arg0, %c0_i32 : i32, i32
  }
}

</mosaic_0001>

<llo_original>
// kernel: tpu_custom_call.1
$region0: #{tpu_custom_call.1}
  #allocation0 [shape = 'u32[]', space=smem, size = 0x4, offset = 0x4, fixed_abs, tag = 'smem constant byte address 0x4 - core index']
  #allocation1 [shape = 'u32[144,128]{1,0:T(1,128)}', space=vmem, size = 0x12000, scoped, tag = 'internal scratch']
  %s0 = inlined_call_operand.vmem [shape: s32[16,1], index: 0, kind: input, shape index: {}]
  %s1 = inlined_call_operand.hbm [shape: f32[32,128], index: 1, kind: input, shape index: {}]
  %s2 = inlined_call_operand.hbm [shape: f32[16,128], index: 2, kind: output, shape index: {}]
  %s3 = sld [smem:[#allocation0]]
  $region22: #{tpu_custom_call.1} parent=0
    _
  %s5 = ssub.s32 1, %s3
  %s6 = scalar_select 0, %s5, %s3
  $region1: #{tpu_custom_call.1} parent=0
    #allocation2 [shape = 'u8[16384]{0}', space=vmem, size = 0x4000, scoped, tag = 'input window, operand 1, single buffered']
    #allocation3 [shape = 's32[1]{0}', space=sflag, size = 0x4, scoped, tag = 'scoped memory for tpu_custom_call.1']
    #allocation4 [shape = 's32[1]{0}', space=sflag, size = 0x4, scoped, tag = 'scoped memory for tpu_custom_call.1']
    #allocation5 [shape = 'u8[8192]{0}', space=vmem, size = 0x2000, scoped, tag = 'output window, operand 0, single buffered']
    %7 = vsyncpa [#allocation3], 0
    %8 = vsyncpa [#allocation4], 0
    // Predicated region
    $region2: #{tpu_custom_call.1} parent=1 // pred_check
      _
    $region3: #{tpu_custom_call.1} parent=1 // pred_check_branch
      %10 = sbr.rel (0) target = $region5
    $region4: #{tpu_custom_call.1} parent=1 // pred_region
      _
    $region5: #{tpu_custom_call.1} parent=1 // pred_fallthru
      _
    // Predicated region
    $region6: #{tpu_custom_call.1} parent=1 // pred_check
      _
    $region7: #{tpu_custom_call.1} parent=1 // pred_check_branch
      %12 = sbr.rel (0) target = $region9
    $region8: #{tpu_custom_call.1} parent=1 // pred_region
      %s14 = ssub.s32 512, 512
      %15 = vsyncadd [#allocation3], %s14
      %s16 = sshll.u32 [#allocation2], 4
      %s17 = int_to_ptr.vmem [resolvable:$true] %s16
      %22 = dma.hbm_to_vmem [thread:$0]  %s1, 512, %s17, [#allocation3], 128, 128, 8
    $region9: #{tpu_custom_call.1} parent=1 // pred_fallthru
      _
    // Predicated region
    $region10: #{tpu_custom_call.1} parent=1 // pred_check
      _
    $region11: #{tpu_custom_call.1} parent=1 // pred_check_branch
      %24 = sbr.rel (0) target = $region13
    $region12: #{tpu_custom_call.1} parent=1 // pred_region
      %25 = dma.done [#allocation3], 512
    $region13: #{tpu_custom_call.1} parent=1 // pred_fallthru
      _
    %v26 = vld [vmem:[%s0] sm:$0xff]
    %v27 = vld [vmem:[%s0 + $0x8] sm:$0xff]
    %v28 = vlaneseq
    %v29 = vand.u32 %v28, 127
    %30 = vset.pattern.permute.xlu0 0
    %31 = vperm.xlu0 %30, %v26
    %v32 = vpop.permute.xlu0 %31
    %33 = vset.pattern.permute.xlu0 0
    %34 = vperm.xlu0 %33, %v27
    %v35 = vpop.permute.xlu0 %34
    %vm36 = vcmp.eq.s32.totalorder %v32, %v29
    %vm37 = vcmp.eq.s32.totalorder %v35, %v29
    %v38 = vsel %vm36, 11.313708, 0.0
    %v39 = vsel %vm37, 11.313708, 0.0
    %v40 = vld [vmem:[#allocation2] sm:$0xff]
    %v41 = vld [vmem:[#allocation2 + $0x8] sm:$0xff]
    %v42 = vld [vmem:[#allocation2 + $0x10] sm:$0xff]
    %v43 = vld [vmem:[#allocation2 + $0x18] sm:$0xff]
    %vm44 = vcmask 261120
    %v46 = vsel %vm44, %v38, 0
    %v49 = vsel %vm44, %v39, 0
    %51 = vmatprep.subr.mxu0 0.0
    %52 = vmatpush1.msra.mxu0 0.0
    %53 = vmatprep.subr.mxu0 0.0
    %54 = vmatpush1.msra.mxu0 0.0
    %55 = vmatprep.subr.mxu0 0.0
    %56 = vmatpush1.msra.mxu0 0.0
    %57 = vmatprep.subr.mxu0 0.0
    %58 = vmatpush1.msra.mxu0 0.0
    %59 = vmatprep.subr.mxu0 0.0
    %60 = vmatpush1.msra.mxu0 0.0
    %61 = vmatprep.subr.mxu0 0.0
    %62 = vmatpush1.msra.mxu0 0.0
    %63 = vmatprep.subr.mxu0 0.0
    %64 = vmatpush1.msra.mxu0 0.0
    %65 = vmatprep.subr.mxu0 0.0
    %66 = vmatpush1.msra.mxu0 0.0
    %67 = vmatprep.subr.mxu0 0.0
    %68 = vmatpush1.msra.mxu0 0.0
    %69 = vmatprep.subr.mxu0 0.0
    %70 = vmatpush1.msra.mxu0 0.0
    %71 = vmatprep.subr.mxu0 0.0
    %72 = vmatpush1.msra.mxu0 0.0
    %73 = vmatprep.subr.mxu0 0.0
    %74 = vmatpush1.msra.mxu0 0.0
    %75 = vmatprep.subr.mxu0 0.0
    %76 = vmatpush1.msra.mxu0 %v43
    %77 = vmatprep.subr.mxu0 0.0
    %78 = vmatpush1.msra.mxu0 %v42
    %79 = vmatprep.subr.mxu0 0.0
    %80 = vmatpush1.msra.mxu0 %v41
    %81 = vmatprep.subr.mxu0 0.0
    %82 = vmatpush1.msra.mxu0 %v40
    %83 = vmatprep.subr.mxu0 0.0
    %84 = vmatpush2.msra.mxu0 0.0
    %85 = vmatprep.subr.mxu0 0.0
    %86 = vmatpush2.msra.mxu0 0.0
    %87 = vmatprep.subr.mxu0 0.0
    %88 = vmatpush2.msra.mxu0 0.0
    %89 = vmatprep.subr.mxu0 0.0
    %90 = vmatpush2.msra.mxu0 0.0
    %91 = vmatprep.subr.mxu0 0.0
    %92 = vmatpush2.msra.mxu0 0.0
    %93 = vmatprep.subr.mxu0 0.0
    %94 = vmatpush2.msra.mxu0 0.0
    %95 = vmatprep.subr.mxu0 0.0
    %96 = vmatpush2.msra.mxu0 0.0
    %97 = vmatprep.subr.mxu0 0.0
    %98 = vmatpush2.msra.mxu0 0.0
    %99 = vmatprep.subr.mxu0 0.0
    %100 = vmatpush2.msra.mxu0 0.0
    %101 = vmatprep.subr.mxu0 0.0
    %102 = vmatpush2.msra.mxu0 0.0
    %103 = vmatprep.subr.mxu0 0.0
    %104 = vmatpush2.msra.mxu0 0.0
    %105 = vmatprep.subr.mxu0 0.0
    %106 = vmatpush2.msra.mxu0 0.0
    %107 = vmatprep.subr.mxu0 0.0
    %108 = vmatpush2.msra.mxu0 0.0
    %109 = vmatprep.subr.mxu0 0.0
    %110 = vmatpush2.msra.mxu0 0.0
    %111 = vmatprep.subr.mxu0 0.0
    %112 = vmatpush2.msra.mxu0 0.0
    %113 = vmatprep.subr.mxu0 0.0
    %114 = vmatpush2.msra.mxu0 0.0
    %115 = vmatprep.mubr.f32.mxu0 0.0
    %116 = vmatmul.mubr.f32.gmra.mxu0 %v46
    %v117 = vpop.f32.mrf.mxu0
    %v118 = vadd.f32 0.0, %v117
    %v119 = vpop.f32.mrf.mxu0
    %120 = vmatprep.mubr.f32.mxu0 0.0
    %121 = vmatmul.mubr.f32.gmra.mxu0 %v49
    %v122 = vpop.f32.mrf.mxu0
    %v123 = vadd.f32 0.0, %v122
    %v124 = vpop.f32.mrf.mxu0
    %125 = vdwg.mxu0
    %126 = vst [vmem:[#allocation5] sm:$0xff] %v118
    %127 = vst [vmem:[#allocation5 + $0x8] sm:$0xff] %v123
    // Predicated region
    $region14: #{tpu_custom_call.1} parent=1 // pred_check
      _
    $region15: #{tpu_custom_call.1} parent=1 // pred_check_branch
      %129 = sbr.rel (0) target = $region17
    $region16: #{tpu_custom_call.1} parent=1 // pred_region
      %s131 = ssub.s32 256, 256
      %132 = vsyncadd [#allocation4], %s131
      %s133 = sshll.u32 [#allocation5], 4
      %s134 = int_to_ptr.vmem [resolvable:$true] %s133
      %139 = dma.vmem_to_hbm [thread:$0]  %s134, 256, %s2, [#allocation4], 128, 128, 8
    $region17: #{tpu_custom_call.1} parent=1 // pred_fallthru
      _
    // Predicated region
    $region18: #{tpu_custom_call.1} parent=1 // pred_check
      _
    $region19: #{tpu_custom_call.1} parent=1 // pred_check_branch
      %141 = sbr.rel (0) target = $region21
    $region20: #{tpu_custom_call.1} parent=1 // pred_region
      %142 = dma.done [#allocation4], 256
    $region21: #{tpu_custom_call.1} parent=1 // pred_fallthru
      _
    %143 = vsyncpa [#allocation3], 1
    %144 = vsyncpa [#allocation4], 1

</llo_original>
